<compile_context>
chip_gen: v7x
topology: tpu7x:2x2x1
jax: 0.10.0
libtpu: 0.0.40
codegen_flags: <defaults>
</compile_context>

<pallas_src>
import jax
import jax.numpy as jnp
from jax import lax
from jax.experimental import pallas as pl
from jax.experimental.pallas import tpu as pltpu


def _bbox_linear_kernel(x_ref, wt_ref, b_ref, yt_ref):
    # Block shapes (per grid step i over row tiles):
    #   x_ref : (TR, D)   wt_ref: (4, D)   b_ref: (4, 1)   yt_ref: (4, TR)
    x = x_ref[...]                                   # (TR, D)
    wt = wt_ref[...]                                 # (4, D)
    # (4, D) · (TR, D)^T -> (4, TR): contraction on the lane dim of both
    # operands (standard "A @ B.T" MXU form); the output row axis lands on the
    # lane dim so the store below is lane-dense.
    yt = lax.dot_general(
        wt, x,
        dimension_numbers=(((1,), (1,)), ((), ())),
        preferred_element_type=jnp.float32,
    )                                                # (4, TR)
    yt_ref[...] = (yt + b_ref[...]).astype(yt_ref.dtype)


def bbox_regression(x_out, loc_scores, w, b, *, row_tile=512):
    """x_out: (B, N, D) f32, loc_scores: (B, N) f32, w: (D, 4), b: (4,)."""
    B, N, D = x_out.shape
    R = B * N
    x2 = x_out.reshape(R, D)

    # Choose the row tile. Single-block case: round rows up to a multiple of 8.
    # Multi-block case: tile must be a multiple of 128 so the (4, TR) output
    # block keeps a lane-aligned last dim.
    TR = row_tile
    if R <= TR:
        TR = max(8, ((R + 7) // 8) * 8)
    else:
        assert TR % 128 == 0, "row_tile must be a multiple of 128 when B*N > row_tile"
    R_pad = pl.cdiv(R, TR) * TR
    if R_pad != R:
        x2 = jnp.pad(x2, ((0, R_pad - R), (0, 0)))

    wt = w.T.reshape(4, D)     # pre-transposed weight, resident across the grid
    b2 = b.reshape(4, 1)

    yt = pl.pallas_call(
        _bbox_linear_kernel,
        out_shape=jax.ShapeDtypeStruct((4, R_pad), jnp.float32),
        grid_spec=pltpu.PrefetchScalarGridSpec(
            num_scalar_prefetch=0,
            grid=(R_pad // TR,),
            in_specs=[
                pl.BlockSpec((TR, D), lambda i: (i, 0)),   # row tile of x
                pl.BlockSpec((4, D), lambda i: (0, 0)),    # w^T (resident)
                pl.BlockSpec((4, 1), lambda i: (0, 0)),    # bias (resident)
            ],
            out_specs=pl.BlockSpec((4, TR), lambda i: (0, i)),
        ),
        compiler_params=pltpu.CompilerParams(
            dimension_semantics=("parallel",)),
    )(x2, wt, b2)

    # Un-transpose the small (4, B*N) slab and restore (B, N, 4).
    bbox_offset_fcn = yt[:, :R].T.reshape(B, N, 4)

    # Row selection on the tiny result in the wrapper (matches
    # bbox_offset_flat[b*N + argmax(loc_scores[b])]).
    idx = jnp.argmax(loc_scores, axis=-1)                          # (B,)
    bbox_offset = jnp.take_along_axis(
        bbox_offset_fcn, idx[:, None, None], axis=1)[:, 0, :]      # (B, 4)
    return bbox_offset, bbox_offset_fcn


def _reference(x_out, loc_scores, w, b):
    B, N, _ = x_out.shape
    ref_fcn = jnp.einsum("bnd,df->bnf", x_out, w) + b
    ref_flat = ref_fcn.reshape(-1, 4)
    slice_inds = jnp.arange(B) * N + jnp.argmax(loc_scores, axis=-1)
    return ref_flat[slice_inds], ref_fcn


if __name__ == "__main__":
    key = jax.random.PRNGKey(0)

    # --- Test 1: small shapes, single grid step ------------------------------
    B, N, CTX_DIM = 2, 8, 32
    k_x, k_loc, k_w, k_b, key = jax.random.split(key, 5)
    x_out = jax.random.normal(k_x, (B, N, CTX_DIM), dtype=jnp.float32)
    loc_scores = jax.random.normal(k_loc, (B, N), dtype=jnp.float32)
    w = jax.random.normal(k_w, (CTX_DIM, 4), dtype=jnp.float32) * 0.1
    b = jax.random.normal(k_b, (4,), dtype=jnp.float32) * 0.1

    bbox_offset, bbox_offset_fcn = jax.block_until_ready(
        bbox_regression(x_out, loc_scores, w, b))
    ref_offset, ref_fcn = _reference(x_out, loc_scores, w, b)

    assert bbox_offset_fcn.shape == (B, N, 4)
    assert bbox_offset.shape == (B, 4)
    assert jnp.allclose(bbox_offset_fcn, ref_fcn, atol=1e-5, rtol=1e-5)
    assert jnp.allclose(bbox_offset, ref_offset, atol=1e-5, rtol=1e-5)

    # --- Test 2: multi-step grid + row padding path ---------------------------
    B2, N2, D2 = 4, 40, 128           # B2*N2 = 160 rows, row_tile=128 -> grid=(2,)
    k_x, k_loc, k_w, k_b, key = jax.random.split(key, 5)
    x_out2 = jax.random.normal(k_x, (B2, N2, D2), dtype=jnp.float32)
    loc_scores2 = jax.random.normal(k_loc, (B2, N2), dtype=jnp.float32)
    w2 = jax.random.normal(k_w, (D2, 4), dtype=jnp.float32) * 0.1
    b2 = jax.random.normal(k_b, (4,), dtype=jnp.float32) * 0.1

    off2, fcn2 = jax.block_until_ready(
        bbox_regression(x_out2, loc_scores2, w2, b2, row_tile=128))
    ref_off2, ref_fcn2 = _reference(x_out2, loc_scores2, w2, b2)

    assert fcn2.shape == (B2, N2, 4)
    assert off2.shape == (B2, 4)
    assert jnp.allclose(fcn2, ref_fcn2, atol=1e-5, rtol=1e-5)
    assert jnp.allclose(off2, ref_off2, atol=1e-5, rtol=1e-5)

    print("KERNEL_OK")
</pallas_src>

<mosaic_0001>
module attributes {stable_mosaic.version = 11 : i64} {
  func.func @_bbox_linear_kernel(%arg0: i32, %arg1: memref<16x32xf32, #tpu.memory_space<vmem>>, %arg2: memref<4x32xf32, #tpu.memory_space<vmem>>, %arg3: memref<4x1xf32, #tpu.memory_space<vmem>>, %arg4: memref<4x16xf32, #tpu.memory_space<vmem>>) attributes {dimension_semantics = [#tpu.dimension_semantics<parallel>], iteration_bounds = array<i64: 1>, scalar_prefetch = 0 : i64, scratch_operands = 0 : i64, tpu.core_type = #tpu.core_type<tc>, window_params = [{transform_indices = @transform_0, window_bounds = array<i64: 16, 32>}, {pipeline_mode = #tpu.pipeline_mode<synchronous>, transform_indices = @transform_1, window_bounds = array<i64: 4, 32>}, {pipeline_mode = #tpu.pipeline_mode<synchronous>, transform_indices = @transform_2, window_bounds = array<i64: 4, 1>}, {transform_indices = @transform_3, window_bounds = array<i64: 4, 16>}]} {
    %c0 = arith.constant 0 : index
    %c0_0 = arith.constant 0 : index
    %0 = vector.load %arg1[%c0, %c0_0] : memref<16x32xf32, #tpu.memory_space<vmem>>, vector<16x32xf32>
    %c0_1 = arith.constant 0 : index
    %c0_2 = arith.constant 0 : index
    %1 = vector.load %arg2[%c0_1, %c0_2] : memref<4x32xf32, #tpu.memory_space<vmem>>, vector<4x32xf32>
    %cst = arith.constant dense<0.000000e+00> : vector<4x16xf32>
    %2 = tpu.matmul %1, %0, %cst {dimension_numbers = #tpu.dot_dimension_numbers<[1], [1], [0], [0], [0, 0, 1, 0], [], []>} : vector<4x32xf32>, vector<16x32xf32>, vector<4x16xf32> -> vector<4x16xf32>
    %c0_3 = arith.constant 0 : index
    %c0_4 = arith.constant 0 : index
    %3 = vector.load %arg3[%c0_3, %c0_4] : memref<4x1xf32, #tpu.memory_space<vmem>>, vector<4x1xf32>
    %4 = vector.broadcast %3 : vector<4x1xf32> to vector<4x16xf32>
    %5 = arith.addf %2, %4 : vector<4x16xf32>
    %c0_5 = arith.constant 0 : index
    %c0_6 = arith.constant 0 : index
    %6 = vector.load %arg4[%c0_5, %c0_6] : memref<4x16xf32, #tpu.memory_space<vmem>>, vector<4x16xf32>
    tpu.vector_store %arg4[%c0_5, %c0_6], %5 {strides = array<i32>} : memref<4x16xf32, #tpu.memory_space<vmem>>, vector<4x16xf32>,
    return
  }
  func.func @transform_0(%arg0: i32) -> (i32, i32) {
    %c0_i32 = arith.constant 0 : i32
    %c0_i32_0 = arith.constant 0 : i32
    return %arg0, %c0_i32 : i32, i32
  }
  func.func @transform_1(%arg0: i32) -> (i32, i32) {
    %c0_i32 = arith.constant 0 : i32
    %c0_i32_0 = arith.constant 0 : i32
    %c0_i32_1 = arith.constant 0 : i32
    return %c0_i32, %c0_i32_0 : i32, i32
  }
  func.func @transform_2(%arg0: i32) -> (i32, i32) {
    %c0_i32 = arith.constant 0 : i32
    %c0_i32_0 = arith.constant 0 : i32
    %c0_i32_1 = arith.constant 0 : i32
    return %c0_i32, %c0_i32_0 : i32, i32
  }
  func.func @transform_3(%arg0: i32) -> (i32, i32) {
    %c0_i32 = arith.constant 0 : i32
    %c0_i32_0 = arith.constant 0 : i32
    return %c0_i32, %arg0 : i32, i32
  }
}

</mosaic_0001>

<llo_original>
// kernel: tpu_custom_call.1
$region0: #{tpu_custom_call.1}
  #allocation0 [shape = 'u32[]', space=smem, size = 0x4, offset = 0x4, fixed_abs, tag = 'smem constant byte address 0x4 - core index']
  #allocation1 [shape = 'u32[144,128]{1,0:T(1,128)}', space=vmem, size = 0x12000, scoped, tag = 'internal scratch']
  %s0 = inlined_call_operand.hbm [shape: f32[16,32], index: 0, kind: input, shape index: {}]
  %s1 = inlined_call_operand.vmem [shape: f32[4,32], index: 1, kind: input, shape index: {}]
  %s2 = inlined_call_operand.vmem [shape: f32[4,1], index: 2, kind: input, shape index: {}]
  %s3 = inlined_call_operand.hbm [shape: f32[4,16], index: 3, kind: output, shape index: {}]
  %s4 = sld [smem:[#allocation0]]
  $region26: #{tpu_custom_call.1} parent=0
    _
  %s6 = ssub.s32 1, %s4
  %s7 = scalar_select 0, %s6, %s4
  $region1: #{tpu_custom_call.1} parent=0
    #allocation2 [shape = 'u8[8192]{0}', space=vmem, size = 0x2000, scoped, tag = 'input window, operand 0, single buffered']
    #allocation3 [shape = 's32[1]{0}', space=sflag, size = 0x4, scoped, tag = 'scoped memory for tpu_custom_call.1']
    #allocation4 [shape = 's32[1]{0}', space=sflag, size = 0x4, scoped, tag = 'scoped memory for tpu_custom_call.1']
    #allocation5 [shape = 'u8[2048]{0}', space=vmem, size = 0x800, scoped, tag = 'output window, operand 0, single buffered']
    %8 = vsyncpa [#allocation3], 0
    %9 = vsyncpa [#allocation4], 0
    // Predicated region
    $region2: #{tpu_custom_call.1} parent=1 // pred_check
      _
    $region3: #{tpu_custom_call.1} parent=1 // pred_check_branch
      %11 = sbr.rel (0) target = $region5
    $region4: #{tpu_custom_call.1} parent=1 // pred_region
      %s13 = ssub.s32 256, 256
      %14 = vsyncadd [#allocation3], %s13
      %s15 = sshll.u32 [#allocation2], 4
      %s16 = int_to_ptr.vmem [resolvable:$true] %s15
      %21 = dma.hbm_to_vmem [thread:$0]  %s0, 256, %s16, [#allocation3], 128, 128, 8
    $region5: #{tpu_custom_call.1} parent=1 // pred_fallthru
      _
    // Predicated region
    $region6: #{tpu_custom_call.1} parent=1 // pred_check
      _
    $region7: #{tpu_custom_call.1} parent=1 // pred_check_branch
      %23 = sbr.rel (0) target = $region9
    $region8: #{tpu_custom_call.1} parent=1 // pred_region
      _
    $region9: #{tpu_custom_call.1} parent=1 // pred_fallthru
      _
    // Predicated region
    $region10: #{tpu_custom_call.1} parent=1 // pred_check
      _
    $region11: #{tpu_custom_call.1} parent=1 // pred_check_branch
      %25 = sbr.rel (0) target = $region13
    $region12: #{tpu_custom_call.1} parent=1 // pred_region
      _
    $region13: #{tpu_custom_call.1} parent=1 // pred_fallthru
      _
    // Predicated region
    $region14: #{tpu_custom_call.1} parent=1 // pred_check
      _
    $region15: #{tpu_custom_call.1} parent=1 // pred_check_branch
      %27 = sbr.rel (0) target = $region17
    $region16: #{tpu_custom_call.1} parent=1 // pred_region
      %28 = dma.done [#allocation3], 256
    $region17: #{tpu_custom_call.1} parent=1 // pred_fallthru
      _
    %v29 = vld [vmem:[#allocation2] sm:$0xff]
    %v30 = vld [vmem:[#allocation2 + $0x8] sm:$0xff]
    %v31 = vld [vmem:[%s1] sm:$0xf]
    %v32 = vld [vmem:[%s2] sm:$0xf]
    %34 = vset.pattern.permute.xlu0 0
    %35 = vperm.xlu0 %34, %v32
    %v36 = vpop.permute.xlu0 %35
    %vm38 = vcmask 261120
    %v40 = vsel %vm38, %v31, 0
    %v43 = vsel %vm38, %v29, 0
    %v46 = vsel %vm38, %v30, 0
    %48 = vmatprep.subr.mxu0 0.0
    %49 = vmatpush1.xpose.msra.mxu0 %v43
    %50 = vmatprep.subr.mxu0 0.0
    %51 = vmatpush1.xpose.msra.mxu0 %v46
    %52 = vmatprep.subr.mxu0 0.0
    %53 = vmatpush1.xpose.msra.mxu0 0.0
    %54 = vmatprep.subr.mxu0 0.0
    %55 = vmatpush1.xpose.msra.mxu0 0.0
    %56 = vmatprep.subr.mxu0 0.0
    %57 = vmatpush1.xpose.msra.mxu0 0.0
    %58 = vmatprep.subr.mxu0 0.0
    %59 = vmatpush1.xpose.msra.mxu0 0.0
    %60 = vmatprep.subr.mxu0 0.0
    %61 = vmatpush1.xpose.msra.mxu0 0.0
    %62 = vmatprep.subr.mxu0 0.0
    %63 = vmatpush1.xpose.msra.mxu0 0.0
    %64 = vmatprep.subr.mxu0 0.0
    %65 = vmatpush1.xpose.msra.mxu0 0.0
    %66 = vmatprep.subr.mxu0 0.0
    %67 = vmatpush1.xpose.msra.mxu0 0.0
    %68 = vmatprep.subr.mxu0 0.0
    %69 = vmatpush1.xpose.msra.mxu0 0.0
    %70 = vmatprep.subr.mxu0 0.0
    %71 = vmatpush1.xpose.msra.mxu0 0.0
    %72 = vmatprep.subr.mxu0 0.0
    %73 = vmatpush1.xpose.msra.mxu0 0.0
    %74 = vmatprep.subr.mxu0 0.0
    %75 = vmatpush1.xpose.msra.mxu0 0.0
    %76 = vmatprep.subr.mxu0 0.0
    %77 = vmatpush1.xpose.msra.mxu0 0.0
    %78 = vmatprep.subr.mxu0 0.0
    %79 = vmatpush1.xpose.msra.mxu0 0.0
    %80 = vmatprep.subr.mxu0 0.0
    %81 = vmatpush1.xpose.msra.mxu0 0.0
    %82 = vmatprep.subr.mxu0 0.0
    %83 = vmatpush1.xpose.msra.mxu0 0.0
    %84 = vmatprep.subr.mxu0 0.0
    %85 = vmatpush1.xpose.msra.mxu0 0.0
    %86 = vmatprep.subr.mxu0 0.0
    %87 = vmatpush1.xpose.msra.mxu0 0.0
    %88 = vmatprep.subr.mxu0 0.0
    %89 = vmatpush1.xpose.msra.mxu0 0.0
    %90 = vmatprep.subr.mxu0 0.0
    %91 = vmatpush1.xpose.msra.mxu0 0.0
    %92 = vmatprep.subr.mxu0 0.0
    %93 = vmatpush1.xpose.msra.mxu0 0.0
    %94 = vmatprep.subr.mxu0 0.0
    %95 = vmatpush1.xpose.msra.mxu0 0.0
    %96 = vmatprep.subr.mxu0 0.0
    %97 = vmatpush1.xpose.msra.mxu0 0.0
    %98 = vmatprep.subr.mxu0 0.0
    %99 = vmatpush1.xpose.msra.mxu0 0.0
    %100 = vmatprep.subr.mxu0 0.0
    %101 = vmatpush1.xpose.msra.mxu0 0.0
    %102 = vmatprep.subr.mxu0 0.0
    %103 = vmatpush1.xpose.msra.mxu0 0.0
    %104 = vmatprep.subr.mxu0 0.0
    %105 = vmatpush1.xpose.msra.mxu0 0.0
    %106 = vmatprep.subr.mxu0 0.0
    %107 = vmatpush1.xpose.msra.mxu0 0.0
    %108 = vmatprep.subr.mxu0 0.0
    %109 = vmatpush1.xpose.msra.mxu0 0.0
    %110 = vmatprep.subr.mxu0 0.0
    %111 = vmatpush1.xpose.msra.mxu0 0.0
    %112 = vmatprep.mubr.f32.mxu0 0.0
    %113 = vmatmul.mubr.f32.gmra.mrb[0].mxu0 %v40
    %v114 = vpop.f32.mrb[0].mxu0
    %v115 = vadd.f32 %v36, %v114
    %v116 = vpop.f32.mrb[0].mxu0
    %117 = vdwg.mxu0
    %vm118 = vcmask 125952
    %119 = vst.msk [vmem:[#allocation5] sm:$0xf] %vm118, %v115
    // Predicated region
    $region18: #{tpu_custom_call.1} parent=1 // pred_check
      _
    $region19: #{tpu_custom_call.1} parent=1 // pred_check_branch
      %121 = sbr.rel (0) target = $region21
    $region20: #{tpu_custom_call.1} parent=1 // pred_region
      %s123 = ssub.s32 64, 64
      %124 = vsyncadd [#allocation4], %s123
      %s126 = sshll.u32 [#allocation5], 4
      %s127 = int_to_ptr.vmem [resolvable:$true] %s126
      %129 = dma.vmem_to_hbm [thread:$0]  %s127, 64, %s3, [#allocation4]
    $region21: #{tpu_custom_call.1} parent=1 // pred_fallthru
      _
    // Predicated region
    $region22: #{tpu_custom_call.1} parent=1 // pred_check
      _
    $region23: #{tpu_custom_call.1} parent=1 // pred_check_branch
      %131 = sbr.rel (0) target = $region25
    $region24: #{tpu_custom_call.1} parent=1 // pred_region
      %132 = dma.done [#allocation4], 64
    $region25: #{tpu_custom_call.1} parent=1 // pred_fallthru
      _
    %133 = vsyncpa [#allocation3], 1
    %134 = vsyncpa [#allocation4], 1

</llo_original>
